<compile_context>
chip_gen: v5e
topology: v5e:2x2
jax: 0.10.0
libtpu: 0.0.40
codegen_flags: <defaults>
</compile_context>

<pallas_src>
import numpy as np
import jax
import jax.numpy as jnp
from jax.experimental import pallas as pl
from jax.experimental.pallas import tpu as pltpu


def _round_up(v, m):
    return (v + m - 1) // m * m


# ----------------------------------------------------------------------------- param packing
def prepare_params(p, dim_input, z_dim):
    """One-time packing of every weight/bias into a single (R, 128*k) f32 slab.

    All transposes / reshapes / column splits happen here, NOT in the forward path.
    Every entry's row offset is aligned to 8 (sublane tile) and the lane width is padded
    to a multiple of 128, so in-kernel slices are tile-aligned.
    Returns (packed_slab, layout, dims) where layout[name] = (row_offset, rows, cols).
    """
    D, Z = dim_input, z_dim
    H1, H2 = max(D // 2, 4), max(D // 4, 4)
    C = _round_up(max(D, H1, H2, 2 * Z), 128)

    entries = [
        # encoder Linear(D+1, H1): split into the x-columns and the c-column
        ("w1t",  p["w1"][:, :D].T),                                        # (D,  H1)
        ("w1c",  p["w1"][:, D].reshape(1, H1)),                            # (1,  H1)
        ("b1",   p["b1"].reshape(1, H1)),                                  # (1,  H1)
        ("w2t",  p["w2"].T),                                               # (H1, H2)
        ("b2",   p["b2"].reshape(1, H2)),                                  # (1,  H2)
        # fc_mu + fc_logvar fused into one matmul: mulv = [mu | logvar]
        ("wmlt", jnp.concatenate([p["wmu"].T, p["wlv"].T], axis=1)),       # (H2, 2Z)
        ("bml",  jnp.concatenate([p["bmu"], p["blv"]]).reshape(1, 2 * Z)), # (1,  2Z)
        # decoder Linear(Z+1, H2): split into the z-columns and the c-column
        ("wd1t", p["wd1"][:, :Z].T),                                       # (Z,  H2)
        ("wd1c", p["wd1"][:, Z].reshape(1, H2)),                           # (1,  H2)
        ("bd1",  p["bd1"].reshape(1, H2)),                                 # (1,  H2)
        ("wd2t", p["wd2"].T),                                              # (H2, H1)
        ("bd2",  p["bd2"].reshape(1, H1)),                                 # (1,  H1)
        ("wd3t", p["wd3"].T),                                              # (H1, D)
        ("bd3",  p["bd3"].reshape(1, D)),                                  # (1,  D)
    ]

    layout, rows, off = {}, [], 0
    for name, arr in entries:
        r, cc = arr.shape
        r_pad = _round_up(r, 8)                  # sublane-align every entry's offset
        layout[name] = (off, r, cc)
        rows.append(jnp.pad(arr.astype(jnp.float32),
                            ((0, r_pad - r), (0, C - cc))))
        off += r_pad
    packed = jnp.concatenate(rows, axis=0)                                 # (R, C)
    dims = dict(D=D, Z=Z, H1=H1, H2=H2, C=C, R=off)
    return packed, layout, dims


# ----------------------------------------------------------------------------- kernel
def _make_kernel(layout, out_w_padded):
    def kernel(c_ref, x_ref, eps_ref, w_ref, out_ref):
        f32 = jnp.float32

        def W(name):                       # static, tile-aligned slice of the packed slab
            off, r, cc = layout[name]
            return w_ref[off:off + r, :cc]

        c = c_ref[0]                       # SMEM scalar (the conditioning value)
        x = x_ref[...]                     # (N, D)
        eps = eps_ref[...]                 # (N, Z) reparameterization noise
        N = x.shape[0]
        Z = eps.shape[1]

        # --- encoder: relu(cat([x, c]) @ W1^T + b1) folded as x@W1t + c*w1c + b1 ---
        h = jnp.dot(x, W("w1t"), preferred_element_type=f32) + W("b1") + c * W("w1c")
        h = jnp.maximum(h, 0.0)
        zenc = jnp.dot(h, W("w2t"), preferred_element_type=f32) + W("b2")       # (N, H2)

        # --- fc_mu / fc_logvar fused into a single (H2, 2Z) matmul ---
        mulv = jnp.dot(zenc, W("wmlt"), preferred_element_type=f32) + W("bml")  # (N, 2Z)
        mu = mulv[:, :Z]
        logvar = mulv[:, Z:]

        # --- reparameterize: z = eps * exp(0.5*logvar) + mu ---
        z = eps * jnp.exp(0.5 * logvar) + mu                                    # (N, Z)

        # --- decoder: cat([z, c]) folded as z@Wd1t + c*wd1c ---
        d = jnp.dot(z, W("wd1t"), preferred_element_type=f32) + W("bd1") + c * W("wd1c")
        d = jnp.maximum(d, 0.0)
        d = jnp.dot(d, W("wd2t"), preferred_element_type=f32) + W("bd2")
        d = jnp.maximum(d, 0.0)
        xrec = jnp.dot(d, W("wd3t"), preferred_element_type=f32) + W("bd3")     # (N, D)

        # --- single lane-dense packed store: [x_recon | z | mu | logvar | 0-pad] ---
        logical_w = xrec.shape[1] + z.shape[1] + mulv.shape[1]
        pieces = [xrec, z, mulv]
        if out_w_padded > logical_w:
            pieces.append(jnp.zeros((N, out_w_padded - logical_w), f32))
        out_ref[...] = jnp.concatenate(pieces, axis=1)
    return kernel


# ----------------------------------------------------------------------------- wrapper
def cvae_forward(x, c, eps, packed, layout, dims):
    N, D = x.shape
    Z, H1, H2 = dims["Z"], dims["H1"], dims["H2"]
    out_w = D + 3 * Z
    out_w_padded = _round_up(out_w, 128)        # full unmasked lane-dense store
    f32 = jnp.float32

    vmem = pl.BlockSpec(memory_space=pltpu.MemorySpace.VMEM)
    smem = pl.BlockSpec(memory_space=pltpu.MemorySpace.SMEM)

    flops = 2 * N * ((D + 1) * H1 + H1 * H2 + H2 * 2 * Z + (Z + 1) * H2 + H2 * H1 + H1 * D)
    cost = pl.CostEstimate(
        flops=flops,
        transcendentals=N * Z,
        bytes_accessed=4 * (x.size + eps.size + packed.size + N * out_w_padded + 1),
    )

    out = pl.pallas_call(
        _make_kernel(layout, out_w_padded),
        out_shape=jax.ShapeDtypeStruct((N, out_w_padded), f32),
        in_specs=[smem, vmem, vmem, vmem],
        out_specs=vmem,
        compiler_params=pltpu.CompilerParams(vmem_limit_bytes=16 * 1024 * 1024),
        cost_estimate=cost,
    )(c.astype(f32), x.astype(f32), eps.astype(f32), packed)

    x_recon = out[:, :D]
    z = out[:, D:D + Z]
    mu = out[:, D + Z:D + 2 * Z]
    logvar = out[:, D + 2 * Z:D + 3 * Z]
    return x_recon, z, mu, logvar


# ----------------------------------------------------------------------------- reference (pure JAX)
def cvae_forward_ref(x, c, eps, p):
    hp = jax.lax.Precision.HIGHEST
    N = x.shape[0]
    c_ = jnp.tile(jnp.reshape(c, (-1, 1)), (N, 1))
    x_cat = jnp.concatenate([x, c_], axis=1)
    h = jnp.maximum(jnp.dot(x_cat, p["w1"].T, precision=hp) + p["b1"], 0.0)
    zenc = jnp.dot(h, p["w2"].T, precision=hp) + p["b2"]
    mu = jnp.dot(zenc, p["wmu"].T, precision=hp) + p["bmu"]
    logvar = jnp.dot(zenc, p["wlv"].T, precision=hp) + p["blv"]
    z = eps * jnp.exp(0.5 * logvar) + mu
    z_cat = jnp.concatenate([z, c_], axis=1)
    d = jnp.maximum(jnp.dot(z_cat, p["wd1"].T, precision=hp) + p["bd1"], 0.0)
    d = jnp.maximum(jnp.dot(d, p["wd2"].T, precision=hp) + p["bd2"], 0.0)
    x_recon = jnp.dot(d, p["wd3"].T, precision=hp) + p["bd3"]
    return x_recon, z, mu, logvar


# ----------------------------------------------------------------------------- params
def init_params(key, dim_input, z_dim):
    D, Z = dim_input, z_dim
    H1, H2 = max(D // 2, 4), max(D // 4, 4)
    f32 = jnp.float32
    ks = jax.random.split(key, 7)

    def kaiming(k, out_f, in_f):
        # kaiming_normal weight + zero bias (what weight_init applies to encoder/decoder)
        return (2.0 / in_f) ** 0.5 * jax.random.normal(k, (out_f, in_f), f32)

    def default_linear(k, out_f, in_f):
        # torch default Linear init (weight_init skips fc_mu / fc_logvar)
        kw, kb = jax.random.split(k)
        lim = 1.0 / (in_f ** 0.5)
        return (jax.random.uniform(kw, (out_f, in_f), f32, -lim, lim),
                jax.random.uniform(kb, (out_f,), f32, -lim, lim))

    p = {}
    p["w1"], p["b1"] = kaiming(ks[0], H1, D + 1), jnp.zeros((H1,), f32)
    p["w2"], p["b2"] = kaiming(ks[1], H2, H1), jnp.zeros((H2,), f32)
    p["wmu"], p["bmu"] = default_linear(ks[2], Z, H2)
    p["wlv"], p["blv"] = default_linear(ks[3], Z, H2)
    p["wd1"], p["bd1"] = kaiming(ks[4], H2, Z + 1), jnp.zeros((H2,), f32)
    p["wd2"], p["bd2"] = kaiming(ks[5], H1, H2), jnp.zeros((H1,), f32)
    p["wd3"], p["bd3"] = kaiming(ks[6], D, H1), jnp.zeros((D,), f32)
    return p


# ----------------------------------------------------------------------------- main
if __name__ == "__main__":
    dim_input, z_dim, batch = 16, 32, 8
    key = jax.random.PRNGKey(0)
    kx, kc, ke, kp = jax.random.split(key, 4)
    x = jax.random.normal(kx, (batch, dim_input), jnp.float32)
    c = jax.random.normal(kc, (1,), jnp.float32)
    # reparameterize noise: generated host-side (same role as torch.randn), shared with reference
    eps = jax.random.normal(ke, (batch, z_dim), jnp.float32)
    params = init_params(kp, dim_input, z_dim)

    # one-time: all transposes / splits / packing hoisted out of the per-call path
    packed, layout, dims = prepare_params(params, dim_input, z_dim)

    x_recon, z, mu, logvar = cvae_forward(x, c, eps, packed, layout, dims)
    jax.block_until_ready((x_recon, z, mu, logvar))

    xr_ref, z_ref, mu_ref, lv_ref = cvae_forward_ref(x, c, eps, params)
    np.testing.assert_allclose(np.asarray(x_recon), np.asarray(xr_ref), rtol=1e-2, atol=1e-2)
    np.testing.assert_allclose(np.asarray(z), np.asarray(z_ref), rtol=1e-2, atol=1e-2)
    np.testing.assert_allclose(np.asarray(mu), np.asarray(mu_ref), rtol=1e-2, atol=1e-2)
    np.testing.assert_allclose(np.asarray(logvar), np.asarray(lv_ref), rtol=1e-2, atol=1e-2)

    print("KERNEL_OK")
</pallas_src>

<mosaic_0001>
module attributes {stable_mosaic.version = 11 : i64} {
  func.func @kernel(%arg0: memref<1xf32, #tpu.memory_space<smem>>, %arg1: memref<8x16xf32, #tpu.memory_space<vmem>>, %arg2: memref<8x32xf32, #tpu.memory_space<vmem>>, %arg3: memref<144x128xf32, #tpu.memory_space<vmem>>, %arg4: memref<8x128xf32, #tpu.memory_space<vmem>>) attributes {dimension_semantics = [], scalar_prefetch = 0 : i64, scratch_operands = 0 : i64, tpu.core_type = #tpu.core_type<tc>} {
    %c0 = arith.constant 0 : index
    %0 = memref.load %arg0[%c0] : memref<1xf32, #tpu.memory_space<smem>>
    %c0_0 = arith.constant 0 : index
    %c0_1 = arith.constant 0 : index
    %1 = vector.load %arg1[%c0_0, %c0_1] : memref<8x16xf32, #tpu.memory_space<vmem>>, vector<8x16xf32>
    %c0_2 = arith.constant 0 : index
    %c0_3 = arith.constant 0 : index
    %2 = vector.load %arg2[%c0_2, %c0_3] : memref<8x32xf32, #tpu.memory_space<vmem>>, vector<8x32xf32>
    %c0_4 = arith.constant 0 : index
    %c0_5 = arith.constant 0 : index
    %3 = vector.load %arg3[%c0_4, %c0_5] : memref<144x128xf32, #tpu.memory_space<vmem>>, vector<16x8xf32>
    %cst = arith.constant dense<0.000000e+00> : vector<8x8xf32>
    %4 = tpu.matmul %1, %3, %cst {dimension_numbers = #tpu.dot_dimension_numbers<[1], [0], [0], [1], [0, 0, 1, 1], [], []>} : vector<8x16xf32>, vector<16x8xf32>, vector<8x8xf32> -> vector<8x8xf32>
    %c24 = arith.constant 24 : index
    %c0_6 = arith.constant 0 : index
    %5 = vector.load %arg3[%c24, %c0_6] : memref<144x128xf32, #tpu.memory_space<vmem>>, vector<1x8xf32>
    %6 = vector.broadcast %5 : vector<1x8xf32> to vector<8x8xf32>
    %7 = arith.addf %4, %6 : vector<8x8xf32>
    %c16 = arith.constant 16 : index
    %c0_7 = arith.constant 0 : index
    %8 = vector.load %arg3[%c16, %c0_7] : memref<144x128xf32, #tpu.memory_space<vmem>>, vector<1x8xf32>
    %9 = vector.broadcast %0 : f32 to vector<1x8xf32>
    %10 = arith.mulf %9, %8 : vector<1x8xf32>
    %11 = vector.broadcast %10 : vector<1x8xf32> to vector<8x8xf32>
    %12 = arith.addf %7, %11 : vector<8x8xf32>
    %cst_8 = arith.constant 0.000000e+00 : f32
    %13 = vector.broadcast %cst_8 : f32 to vector<8x8xf32>
    %14 = arith.maximumf %12, %13 : vector<8x8xf32>
    %c32 = arith.constant 32 : index
    %c0_9 = arith.constant 0 : index
    %15 = vector.load %arg3[%c32, %c0_9] : memref<144x128xf32, #tpu.memory_space<vmem>>, vector<8x4xf32>
    %cst_10 = arith.constant dense<0.000000e+00> : vector<8x4xf32>
    %16 = tpu.matmul %14, %15, %cst_10 {dimension_numbers = #tpu.dot_dimension_numbers<[1], [0], [0], [1], [0, 0, 1, 1], [], []>} : vector<8x8xf32>, vector<8x4xf32>, vector<8x4xf32> -> vector<8x4xf32>
    %c40 = arith.constant 40 : index
    %c0_11 = arith.constant 0 : index
    %17 = vector.load %arg3[%c40, %c0_11] : memref<144x128xf32, #tpu.memory_space<vmem>>, vector<1x4xf32>
    %18 = vector.broadcast %17 : vector<1x4xf32> to vector<8x4xf32>
    %19 = arith.addf %16, %18 : vector<8x4xf32>
    %c48 = arith.constant 48 : index
    %c0_12 = arith.constant 0 : index
    %20 = vector.load %arg3[%c48, %c0_12] : memref<144x128xf32, #tpu.memory_space<vmem>>, vector<4x64xf32>
    %cst_13 = arith.constant dense<0.000000e+00> : vector<8x64xf32>
    %21 = tpu.matmul %19, %20, %cst_13 {dimension_numbers = #tpu.dot_dimension_numbers<[1], [0], [0], [1], [0, 0, 1, 1], [], []>} : vector<8x4xf32>, vector<4x64xf32>, vector<8x64xf32> -> vector<8x64xf32>
    %c56 = arith.constant 56 : index
    %c0_14 = arith.constant 0 : index
    %22 = vector.load %arg3[%c56, %c0_14] : memref<144x128xf32, #tpu.memory_space<vmem>>, vector<1x64xf32>
    %23 = vector.broadcast %22 : vector<1x64xf32> to vector<8x64xf32>
    %24 = arith.addf %21, %23 : vector<8x64xf32>
    %25 = vector.extract_strided_slice %24 {offsets = [0, 0], sizes = [8, 32], strides = [1, 1]} : vector<8x64xf32> to vector<8x32xf32>
    %26 = vector.extract_strided_slice %24 {offsets = [0, 32], sizes = [8, 32], strides = [1, 1]} : vector<8x64xf32> to vector<8x32xf32>
    %cst_15 = arith.constant 5.000000e-01 : f32
    %27 = vector.broadcast %cst_15 : f32 to vector<8x32xf32>
    %28 = arith.mulf %27, %26 : vector<8x32xf32>
    %29 = math.exp %28 : vector<8x32xf32>
    %30 = arith.mulf %2, %29 : vector<8x32xf32>
    %31 = arith.addf %30, %25 : vector<8x32xf32>
    %c64 = arith.constant 64 : index
    %c0_16 = arith.constant 0 : index
    %32 = vector.load %arg3[%c64, %c0_16] : memref<144x128xf32, #tpu.memory_space<vmem>>, vector<32x4xf32>
    %cst_17 = arith.constant dense<0.000000e+00> : vector<8x4xf32>
    %33 = tpu.matmul %31, %32, %cst_17 {dimension_numbers = #tpu.dot_dimension_numbers<[1], [0], [0], [1], [0, 0, 1, 1], [], []>} : vector<8x32xf32>, vector<32x4xf32>, vector<8x4xf32> -> vector<8x4xf32>
    %c104 = arith.constant 104 : index
    %c0_18 = arith.constant 0 : index
    %34 = vector.load %arg3[%c104, %c0_18] : memref<144x128xf32, #tpu.memory_space<vmem>>, vector<1x4xf32>
    %35 = vector.broadcast %34 : vector<1x4xf32> to vector<8x4xf32>
    %36 = arith.addf %33, %35 : vector<8x4xf32>
    %c96 = arith.constant 96 : index
    %c0_19 = arith.constant 0 : index
    %37 = vector.load %arg3[%c96, %c0_19] : memref<144x128xf32, #tpu.memory_space<vmem>>, vector<1x4xf32>
    %38 = vector.broadcast %0 : f32 to vector<1x4xf32>
    %39 = arith.mulf %38, %37 : vector<1x4xf32>
    %40 = vector.broadcast %39 : vector<1x4xf32> to vector<8x4xf32>
    %41 = arith.addf %36, %40 : vector<8x4xf32>
    %cst_20 = arith.constant 0.000000e+00 : f32
    %42 = vector.broadcast %cst_20 : f32 to vector<8x4xf32>
    %43 = arith.maximumf %41, %42 : vector<8x4xf32>
    %c112 = arith.constant 112 : index
    %c0_21 = arith.constant 0 : index
    %44 = vector.load %arg3[%c112, %c0_21] : memref<144x128xf32, #tpu.memory_space<vmem>>, vector<4x8xf32>
    %cst_22 = arith.constant dense<0.000000e+00> : vector<8x8xf32>
    %45 = tpu.matmul %43, %44, %cst_22 {dimension_numbers = #tpu.dot_dimension_numbers<[1], [0], [0], [1], [0, 0, 1, 1], [], []>} : vector<8x4xf32>, vector<4x8xf32>, vector<8x8xf32> -> vector<8x8xf32>
    %c120 = arith.constant 120 : index
    %c0_23 = arith.constant 0 : index
    %46 = vector.load %arg3[%c120, %c0_23] : memref<144x128xf32, #tpu.memory_space<vmem>>, vector<1x8xf32>
    %47 = vector.broadcast %46 : vector<1x8xf32> to vector<8x8xf32>
    %48 = arith.addf %45, %47 : vector<8x8xf32>
    %cst_24 = arith.constant 0.000000e+00 : f32
    %49 = vector.broadcast %cst_24 : f32 to vector<8x8xf32>
    %50 = arith.maximumf %48, %49 : vector<8x8xf32>
    %c128 = arith.constant 128 : index
    %c0_25 = arith.constant 0 : index
    %51 = vector.load %arg3[%c128, %c0_25] : memref<144x128xf32, #tpu.memory_space<vmem>>, vector<8x16xf32>
    %cst_26 = arith.constant dense<0.000000e+00> : vector<8x16xf32>
    %52 = tpu.matmul %50, %51, %cst_26 {dimension_numbers = #tpu.dot_dimension_numbers<[1], [0], [0], [1], [0, 0, 1, 1], [], []>} : vector<8x8xf32>, vector<8x16xf32>, vector<8x16xf32> -> vector<8x16xf32>
    %c136 = arith.constant 136 : index
    %c0_27 = arith.constant 0 : index
    %53 = vector.load %arg3[%c136, %c0_27] : memref<144x128xf32, #tpu.memory_space<vmem>>, vector<1x16xf32>
    %54 = vector.broadcast %53 : vector<1x16xf32> to vector<8x16xf32>
    %55 = arith.addf %52, %54 : vector<8x16xf32>
    %cst_28 = arith.constant 0.000000e+00 : f32
    %56 = vector.broadcast %cst_28 : f32 to vector<8x16xf32>
    %57 = tpu.concatenate %55, %31, %24, %56 in 1 : vector<8x16xf32>, vector<8x32xf32>, vector<8x64xf32>, vector<8x16xf32> -> vector<8x128xf32>
    %c0_29 = arith.constant 0 : index
    %c0_30 = arith.constant 0 : index
    %58 = vector.load %arg4[%c0_29, %c0_30] : memref<8x128xf32, #tpu.memory_space<vmem>>, vector<8x128xf32>
    tpu.vector_store %arg4[%c0_29, %c0_30], %57 {strides = array<i32>} : memref<8x128xf32, #tpu.memory_space<vmem>>, vector<8x128xf32>,
    return
  }
}

</mosaic_0001>

<llo_original>
// kernel: tpu_custom_call.1
$region0: #{tpu_custom_call.1}
  #allocation0 [shape = 'u32[]', space=smem, size = 0x4, offset = 0x4, fixed_abs, tag = 'smem constant byte address 0x4 - core index']
  #allocation1 [shape = 'u32[72,128]{1,0:T(1,128)}', space=vmem, size = 0x9000, scoped, tag = 'internal scratch']
  #allocation2 [shape = 'f32[1]{0:T(128)S(6)}', space=smem, size = 0x200, scoped, tag = 'scoped memory for tpu_custom_call.1']
  %s0 = inlined_call_operand.<no memory space> [shape: f32[1], index: 0, kind: input, shape index: {}]
  %s1 = inlined_call_operand.hbm [shape: f32[8,16], index: 1, kind: input, shape index: {}]
  %s2 = inlined_call_operand.hbm [shape: f32[8,32], index: 2, kind: input, shape index: {}]
  %s3 = inlined_call_operand.hbm [shape: f32[144,128], index: 3, kind: input, shape index: {}]
  %s4 = inlined_call_operand.hbm [shape: f32[8,128], index: 4, kind: output, shape index: {}]
  %s5 = sld [smem:[#allocation0]]
  $region38: #{tpu_custom_call.1} parent=0
    _
  %s7 = ssub.s32 1, %s5
  %s8 = scalar_select 0, %s7, %s5
  %9 = sst [smem:[#allocation2]] %s0
  $region1: #{tpu_custom_call.1} parent=0
    #allocation3 [shape = 'u8[4096]{0}', space=vmem, size = 0x1000, scoped, tag = 'input window, operand 1, single buffered']
    #allocation4 [shape = 's32[1]{0}', space=sflag, size = 0x4, scoped, tag = 'scoped memory for tpu_custom_call.1']
    #allocation5 [shape = 's32[1]{0}', space=sflag, size = 0x4, scoped, tag = 'scoped memory for tpu_custom_call.1']
    #allocation6 [shape = 'u8[4096]{0}', space=vmem, size = 0x1000, scoped, tag = 'input window, operand 2, single buffered']
    #allocation7 [shape = 's32[1]{0}', space=sflag, size = 0x4, scoped, tag = 'scoped memory for tpu_custom_call.1']
    #allocation8 [shape = 'u8[73728]{0}', space=vmem, size = 0x12000, scoped, tag = 'input window, operand 3, single buffered']
    #allocation9 [shape = 'u8[4096]{0}', space=vmem, size = 0x1000, scoped, tag = 'output window, operand 0, single buffered']
    %10 = vsyncpa [#allocation4], 0
    %11 = vsyncpa [#allocation7], 0
    %12 = vsyncpa [#allocation5], 0
    // Predicated region
    $region2: #{tpu_custom_call.1} parent=1 // pred_check
      _
    $region3: #{tpu_custom_call.1} parent=1 // pred_check_branch
      %14 = sbr.rel (0) target = $region5
    $region4: #{tpu_custom_call.1} parent=1 // pred_region
      _
    $region5: #{tpu_custom_call.1} parent=1 // pred_fallthru
      _
    // Predicated region
    $region6: #{tpu_custom_call.1} parent=1 // pred_check
      _
    $region7: #{tpu_custom_call.1} parent=1 // pred_check_branch
      %16 = sbr.rel (0) target = $region9
    $region8: #{tpu_custom_call.1} parent=1 // pred_region
      %18 = vsyncadd [#allocation4], 0
      %s20 = sshll.u32 %s1, 4
      %s21 = int_to_ptr.hbm [resolvable:$true] %s20
      %s22 = sshll.u32 [#allocation3], 4
      %s23 = int_to_ptr.vmem [resolvable:$true] %s22
      %25 = dma.hbm_to_vmem [thread:$0]  %s21, 128, %s23, [#allocation4]
    $region9: #{tpu_custom_call.1} parent=1 // pred_fallthru
      _
    // Predicated region
    $region10: #{tpu_custom_call.1} parent=1 // pred_check
      _
    $region11: #{tpu_custom_call.1} parent=1 // pred_check_branch
      %27 = sbr.rel (0) target = $region13
    $region12: #{tpu_custom_call.1} parent=1 // pred_region
      %29 = vsyncadd [#allocation7], 0
      %s31 = sshll.u32 %s2, 4
      %s32 = int_to_ptr.hbm [resolvable:$true] %s31
      %s33 = sshll.u32 [#allocation6], 4
      %s34 = int_to_ptr.vmem [resolvable:$true] %s33
      %36 = dma.hbm_to_vmem [thread:$0]  %s32, 128, %s34, [#allocation7]
    $region13: #{tpu_custom_call.1} parent=1 // pred_fallthru
      _
    // Predicated region
    $region14: #{tpu_custom_call.1} parent=1 // pred_check
      _
    $region15: #{tpu_custom_call.1} parent=1 // pred_check_branch
      %38 = sbr.rel (0) target = $region17
    $region16: #{tpu_custom_call.1} parent=1 // pred_region
      %40 = vsyncadd [#allocation7], 0
      %s41 = sshll.u32 %s3, 4
      %s42 = int_to_ptr.hbm [resolvable:$true] %s41
      %s43 = sshll.u32 [#allocation8], 4
      %s44 = int_to_ptr.vmem [resolvable:$true] %s43
      %49 = dma.hbm_to_vmem [thread:$0]  %s42, 2304, %s44, [#allocation7], 128, 128, 8
    $region17: #{tpu_custom_call.1} parent=1 // pred_fallthru
      _
    // Predicated region
    $region18: #{tpu_custom_call.1} parent=1 // pred_check
      _
    $region19: #{tpu_custom_call.1} parent=1 // pred_check_branch
      %51 = sbr.rel (0) target = $region21
    $region20: #{tpu_custom_call.1} parent=1 // pred_region
      %53 = dma.done [#allocation4], 128
    $region21: #{tpu_custom_call.1} parent=1 // pred_fallthru
      _
    // Predicated region
    $region22: #{tpu_custom_call.1} parent=1 // pred_check
      _
    $region23: #{tpu_custom_call.1} parent=1 // pred_check_branch
      %55 = sbr.rel (0) target = $region25
    $region24: #{tpu_custom_call.1} parent=1 // pred_region
      %57 = dma.done [#allocation7], 128
    $region25: #{tpu_custom_call.1} parent=1 // pred_fallthru
      _
    // Predicated region
    $region26: #{tpu_custom_call.1} parent=1 // pred_check
      _
    $region27: #{tpu_custom_call.1} parent=1 // pred_check_branch
      %59 = sbr.rel (0) target = $region29
    $region28: #{tpu_custom_call.1} parent=1 // pred_region
      %61 = dma.done [#allocation7], 2304
    $region29: #{tpu_custom_call.1} parent=1 // pred_fallthru
      _
    %s62 = sld [smem:[#allocation2]]
    %v63 = vld [vmem:[#allocation3] sm:$0xff]
    %v64 = vld [vmem:[#allocation6] sm:$0xff]
    %v65 = vld [vmem:[#allocation8] sm:$0xff]
    %v66 = vld [vmem:[#allocation8 + $0x8] sm:$0xff]
    %v67 = vld [vmem:[#allocation8 + $0x18] sm:$0x1]
    %v68 = vperm.slane %v67, 0
    %vm69 = vcmask 130048
    %v71 = vsel %vm69, %v63, 0
    %73 = vmatpush.msra.mxu0 0.0
    %74 = vmatpush.msra.mxu0 0.0
    %75 = vmatpush.msra.mxu0 0.0
    %76 = vmatpush.msra.mxu0 0.0
    %77 = vmatpush.msra.mxu0 0.0
    %78 = vmatpush.msra.mxu0 0.0
    %79 = vmatpush.msra.mxu0 0.0
    %80 = vmatpush.msra.mxu0 0.0
    %81 = vmatpush.msra.mxu0 0.0
    %82 = vmatpush.msra.mxu0 0.0
    %83 = vmatpush.msra.mxu0 0.0
    %84 = vmatpush.msra.mxu0 0.0
    %85 = vmatpush.msra.mxu0 0.0
    %86 = vmatpush.msra.mxu0 0.0
    %87 = vmatpush.msra.mxu0 %v66
    %88 = vmatpush.msra.mxu0 %v65
    %89 = vmatmul.f32.gmra.mxu0 %v71
    %v90 = vpop.f32.mrf.mxu0
    %v91 = vadd.f32 %v68, %v90
    %92 = vdwg.mxu0
    %v93 = vld [vmem:[#allocation8 + $0x10] sm:$0x1]
    %v94 = vstv %s62
    %v95 = vmul.f32 %v94, %v93
    %v96 = vperm.slane %v95, 0
    %v97 = vadd.f32 %v91, %v96
    %v98 = vmax.f32 %v97, 0.0
    %v99 = vld [vmem:[#allocation8 + $0x20] sm:$0xff]
    %v100 = vld [vmem:[#allocation8 + $0x28] sm:$0x1]
    %v101 = vperm.slane %v100, 0
    %vm102 = vcmask 64512
    %v104 = vsel %vm102, %v98, 0
    %106 = vmatpush.msra.mxu0 0.0
    %107 = vmatpush.msra.mxu0 0.0
    %108 = vmatpush.msra.mxu0 0.0
    %109 = vmatpush.msra.mxu0 0.0
    %110 = vmatpush.msra.mxu0 0.0
    %111 = vmatpush.msra.mxu0 0.0
    %112 = vmatpush.msra.mxu0 0.0
    %113 = vmatpush.msra.mxu0 0.0
    %114 = vmatpush.msra.mxu0 0.0
    %115 = vmatpush.msra.mxu0 0.0
    %116 = vmatpush.msra.mxu0 0.0
    %117 = vmatpush.msra.mxu0 0.0
    %118 = vmatpush.msra.mxu0 0.0
    %119 = vmatpush.msra.mxu0 0.0
    %120 = vmatpush.msra.mxu0 0.0
    %121 = vmatpush.msra.mxu0 %v99
    %122 = vmatmul.f32.gmra.mxu0 %v104
    %v123 = vpop.f32.mrf.mxu0
    %v124 = vadd.f32 %v101, %v123
    %125 = vdwg.mxu0
    %v126 = vld [vmem:[#allocation8 + $0x30] sm:$0xf]
    %v127 = vld [vmem:[#allocation8 + $0x38] sm:$0x1]
    %v128 = vperm.slane %v127, 0
    %vm129 = vcmask 31744
    %v131 = vsel %vm129, %v124, 0
    %vm133 = vcmask 1043456
    %v135 = vsel %vm133, %v126, 0
    %137 = vmatpush.msra.mxu0 0.0
    %138 = vmatpush.msra.mxu0 0.0
    %139 = vmatpush.msra.mxu0 0.0
    %140 = vmatpush.msra.mxu0 0.0
    %141 = vmatpush.msra.mxu0 0.0
    %142 = vmatpush.msra.mxu0 0.0
    %143 = vmatpush.msra.mxu0 0.0
    %144 = vmatpush.msra.mxu0 0.0
    %145 = vmatpush.msra.mxu0 0.0
    %146 = vmatpush.msra.mxu0 0.0
    %147 = vmatpush.msra.mxu0 0.0
    %148 = vmatpush.msra.mxu0 0.0
    %149 = vmatpush.msra.mxu0 0.0
    %150 = vmatpush.msra.mxu0 0.0
    %151 = vmatpush.msra.mxu0 0.0
    %152 = vmatpush.msra.mxu0 %v135
    %153 = vmatmul.f32.gmra.mxu0 %v131
    %v154 = vpop.f32.mrf.mxu0
    %v155 = vadd.f32 %v128, %v154
    %156 = vdwg.mxu0
    %v157 = vmul.f32 %v155, 0.5
    %v158 = vmul.f32 %v157, 1.442695
    %v159 = vpow.pop %v158
    %161 = vrot.lane.b32.xlu0 %v159, 96
    %v162 = vpop.permute.xlu0 %161
    %v164 = vmul.f32 %v64, %v162
    %v165 = vadd.f32 %v164, %v155
    %v166 = vld [vmem:[#allocation8 + $0x40] sm:$0xff]
    %v167 = vld [vmem:[#allocation8 + $0x48] sm:$0xff]
    %v168 = vld [vmem:[#allocation8 + $0x50] sm:$0xff]
    %v169 = vld [vmem:[#allocation8 + $0x58] sm:$0xff]
    %v170 = vld [vmem:[#allocation8 + $0x68] sm:$0x1]
    %v171 = vperm.slane %v170, 0
    %vm172 = vcmask 261120
    %v174 = vsel %vm172, %v165, 0
    %176 = vmatpush.msra.mxu0 0.0
    %177 = vmatpush.msra.mxu0 0.0
    %178 = vmatpush.msra.mxu0 0.0
    %179 = vmatpush.msra.mxu0 0.0
    %180 = vmatpush.msra.mxu0 0.0
    %181 = vmatpush.msra.mxu0 0.0
    %182 = vmatpush.msra.mxu0 0.0
    %183 = vmatpush.msra.mxu0 0.0
    %184 = vmatpush.msra.mxu0 0.0
    %185 = vmatpush.msra.mxu0 0.0
    %186 = vmatpush.msra.mxu0 0.0
    %187 = vmatpush.msra.mxu0 0.0
    %188 = vmatpush.msra.mxu0 %v169
    %189 = vmatpush.msra.mxu0 %v168
    %190 = vmatpush.msra.mxu0 %v167
    %191 = vmatpush.msra.mxu0 %v166
    %192 = vmatmul.f32.gmra.mxu0 %v174
    %v193 = vpop.f32.mrf.mxu0
    %v194 = vadd.f32 %v171, %v193
    %195 = vdwg.mxu0
    %v196 = vld [vmem:[#allocation8 + $0x60] sm:$0x1]
    %v197 = vmul.f32 %v94, %v196
    %v198 = vperm.slane %v197, 0
    %v199 = vadd.f32 %v194, %v198
    %v200 = vmax.f32 %v199, 0.0
    %v201 = vld [vmem:[#allocation8 + $0x70] sm:$0xf]
    %v202 = vld [vmem:[#allocation8 + $0x78] sm:$0x1]
    %v203 = vperm.slane %v202, 0
    %v205 = vsel %vm129, %v200, 0
    %v208 = vsel %vm133, %v201, 0
    %210 = vmatpush.msra.mxu0 0.0
    %211 = vmatpush.msra.mxu0 0.0
    %212 = vmatpush.msra.mxu0 0.0
    %213 = vmatpush.msra.mxu0 0.0
    %214 = vmatpush.msra.mxu0 0.0
    %215 = vmatpush.msra.mxu0 0.0
    %216 = vmatpush.msra.mxu0 0.0
    %217 = vmatpush.msra.mxu0 0.0
    %218 = vmatpush.msra.mxu0 0.0
    %219 = vmatpush.msra.mxu0 0.0
    %220 = vmatpush.msra.mxu0 0.0
    %221 = vmatpush.msra.mxu0 0.0
    %222 = vmatpush.msra.mxu0 0.0
    %223 = vmatpush.msra.mxu0 0.0
    %224 = vmatpush.msra.mxu0 0.0
    %225 = vmatpush.msra.mxu0 %v208
    %226 = vmatmul.f32.gmra.mxu0 %v205
    %v227 = vpop.f32.mrf.mxu0
    %v228 = vadd.f32 %v203, %v227
    %229 = vdwg.mxu0
    %v230 = vmax.f32 %v228, 0.0
    %v231 = vld [vmem:[#allocation8 + $0x80] sm:$0xff]
    %v232 = vld [vmem:[#allocation8 + $0x88] sm:$0x1]
    %v233 = vperm.slane %v232, 0
    %v235 = vsel %vm102, %v230, 0
    %237 = vmatpush.msra.mxu0 0.0
    %238 = vmatpush.msra.mxu0 0.0
    %239 = vmatpush.msra.mxu0 0.0
    %240 = vmatpush.msra.mxu0 0.0
    %241 = vmatpush.msra.mxu0 0.0
    %242 = vmatpush.msra.mxu0 0.0
    %243 = vmatpush.msra.mxu0 0.0
    %244 = vmatpush.msra.mxu0 0.0
    %245 = vmatpush.msra.mxu0 0.0
    %246 = vmatpush.msra.mxu0 0.0
    %247 = vmatpush.msra.mxu0 0.0
    %248 = vmatpush.msra.mxu0 0.0
    %249 = vmatpush.msra.mxu0 0.0
    %250 = vmatpush.msra.mxu0 0.0
    %251 = vmatpush.msra.mxu0 0.0
    %252 = vmatpush.msra.mxu0 %v231
    %253 = vmatmul.f32.gmra.mxu0 %v235
    %v254 = vpop.f32.mrf.mxu0
    %v255 = vadd.f32 %v233, %v254
    %256 = vdwg.mxu0
    %257 = vrot.lane.b32.xlu0 %v165, 16
    %v258 = vpop.permute.xlu0 %257
    %261 = vrot.lane.b32.xlu0 %v155, 48
    %v262 = vpop.permute.xlu0 %261
    %v264 = vsel %vm69, %v255, %v258
    %vm265 = vcmask 392192
    %v266 = vsel %vm265, %v264, %v262
    %vm267 = vcmask 916480
    %v268 = vsel %vm267, %v266, 0.0
    %269 = vst [vmem:[#allocation9] sm:$0xff] %v268
    // Predicated region
    $region30: #{tpu_custom_call.1} parent=1 // pred_check
      _
    $region31: #{tpu_custom_call.1} parent=1 // pred_check_branch
      %271 = sbr.rel (0) target = $region33
    $region32: #{tpu_custom_call.1} parent=1 // pred_region
      %273 = vsyncadd [#allocation5], 0
      %s275 = sshll.u32 [#allocation9], 4
      %s276 = int_to_ptr.vmem [resolvable:$true] %s275
      %s277 = sshll.u32 %s4, 4
      %s278 = int_to_ptr.hbm [resolvable:$true] %s277
      %280 = dma.vmem_to_hbm [thread:$0]  %s276, 128, %s278, [#allocation5]
    $region33: #{tpu_custom_call.1} parent=1 // pred_fallthru
      _
    // Predicated region
    $region34: #{tpu_custom_call.1} parent=1 // pred_check
      _
    $region35: #{tpu_custom_call.1} parent=1 // pred_check_branch
      %282 = sbr.rel (0) target = $region37
    $region36: #{tpu_custom_call.1} parent=1 // pred_region
      %284 = dma.done [#allocation5], 128
    $region37: #{tpu_custom_call.1} parent=1 // pred_fallthru
      _
    %285 = vsyncpa [#allocation4], 1
    %286 = vsyncpa [#allocation7], 1
    %287 = vsyncpa [#allocation5], 1

</llo_original>
